<compile_context>
chip_gen: v7x
topology: tpu7x:2x2x1
jax: 0.10.0
libtpu: 0.0.40
codegen_flags: <defaults>
</compile_context>

<pallas_src>
import itertools
import numpy as np

import jax
import jax.numpy as jnp
from jax.experimental import pallas as pl
from jax.experimental.pallas import tpu as pltpu


def _round_up(x, m):
    return (x + m - 1) // m * m


def _cdiv(a, b):
    return (a + b - 1) // b


# -----------------------------------------------------------------------------
# Pallas kernel: (tile_n, KCp) @ (KCp, Cout_pad) -> *scale + shift -> LeakyReLU
# -----------------------------------------------------------------------------
def _conv_bn_lrelu_kernel(g_ref, w_ref, scale_ref, shift_ref, o_ref):
    # One MXU matmul per N-tile (bf16 in, f32 accumulate), then the BatchNorm
    # affine (f32 per-channel) and LeakyReLU(0.01) on the VPU; store in bf16.
    acc = jnp.dot(g_ref[...], w_ref[...], preferred_element_type=jnp.float32)
    y = acc * scale_ref[...] + shift_ref[...]
    o_ref[...] = jnp.where(y > 0, y, 0.01 * y).astype(o_ref.dtype)


def _vmem_budget_bytes():
    """Generation-aware scoped-VMEM budget (conservative on v7x / unknown HW)."""
    try:
        info = pltpu.get_tpu_info()
        phys = getattr(info, "vmem_capacity_bytes", None) or 64 * 1024 * 1024
    except Exception:
        phys = 64 * 1024 * 1024            # unknown -> be conservative (v7x-safe)
    if phys <= 64 * 1024 * 1024:           # v7x: 64 MiB per TensorCore
        return 48 * 1024 * 1024
    return 96 * 1024 * 1024                # v5e / v6e: 128 MiB physical


def _choose_tile_n(N, tile_n_max, min_tiles=2):
    """Balanced, 16-row (bf16 sublane) aligned tile; at least `min_tiles` grid
    steps when the problem allows, so the parallel axis shards across v7x's 2 TCs."""
    sub = 16
    tile_n_max = max(sub, (tile_n_max // sub) * sub)
    n_tiles = _cdiv(N, tile_n_max)
    if n_tiles < min_tiles and N > sub:
        n_tiles = min_tiles
    return max(sub, _round_up(_cdiv(N, n_tiles), sub))


def sparse_conv_bn_lrelu(gathered_flat, weights, bn_scale, bn_shift, *,
                         tile_n=512, compute_dtype=jnp.bfloat16,
                         out_dtype=jnp.bfloat16):
    """Fused MinkowskiConvolution(stride=1) + BatchNorm(eval) + LeakyReLU(0.01).

    gathered_flat: (N, K*Cin)  neighbor features (zeros for missing neighbors)
    weights:       (K, Cin, Cout) convolution weights
    bn_scale/bn_shift: (Cout,) folded BatchNorm affine (eval mode, running stats)
    returns:       (N, Cout) in out_dtype (bf16 by default: halves HBM writeback)
    """
    N, KC = gathered_flat.shape
    K, Cin, Cout = weights.shape
    assert KC == K * Cin

    # --- channel padding: lane-dense output, aligned contraction dim ----------
    cout_pad = _round_up(Cout, 128)
    if KC % 128 != 0 and KC < 128:
        kc_pad = 128                        # small-Cin configs (e.g. 27*4 = 108)
    else:
        kc_pad = _round_up(KC, 16)          # bf16 sublane packing for the weights

    w_flat = weights.astype(jnp.float32).reshape(KC, Cout)
    w_flat = jnp.pad(w_flat, ((0, kc_pad - KC), (0, cout_pad - Cout)))
    # BN affine stays in f32 and is applied in the epilogue (numerically safer
    # than folding the per-channel scale into the bf16 weights).
    scale2d = jnp.pad(bn_scale.astype(jnp.float32),
                      (0, cout_pad - Cout)).reshape(1, cout_pad)
    shift2d = jnp.pad(bn_shift.astype(jnp.float32),
                      (0, cout_pad - Cout)).reshape(1, cout_pad)

    # --- generation-aware VMEM budget -> tile_n cap ----------------------------
    vmem_budget = _vmem_budget_bytes()
    in_isz = jnp.dtype(compute_dtype).itemsize
    out_isz = jnp.dtype(out_dtype).itemsize
    w_bytes = kc_pad * cout_pad * in_isz
    per_row = 2 * (kc_pad * in_isz + cout_pad * out_isz)   # double-buffered stream
    avail = vmem_budget - 2 * w_bytes - (1 << 20)          # reserve weights + slack
    tile_cap = max(16, (max(avail, 16 * per_row) // per_row) // 16 * 16)
    tile_n = _choose_tile_n(N, min(tile_n, tile_cap))

    # --- pad the point dim and cast the matmul operands ------------------------
    Np = _round_up(N, tile_n)
    g = jnp.pad(gathered_flat,
                ((0, Np - N), (0, kc_pad - KC))).astype(compute_dtype)
    w_flat = w_flat.astype(compute_dtype)

    def _call(single_buffer_resident):
        res_kw = ({"pipeline_mode": pl.Buffered(1)}
                  if single_buffer_resident else {})
        in_specs = [
            # Streamed gathered tile (default double buffering; raise to
            # pl.Buffered(3) on v5e if profiling shows exposed DMA).
            pl.BlockSpec((tile_n, kc_pad), lambda i: (i, 0)),
            # Grid-invariant (VMEM-resident) weights / BN affine.
            pl.BlockSpec((kc_pad, cout_pad), lambda i: (0, 0), **res_kw),
            pl.BlockSpec((1, cout_pad), lambda i: (0, 0), **res_kw),
            pl.BlockSpec((1, cout_pad), lambda i: (0, 0), **res_kw),
        ]
        return pl.pallas_call(
            _conv_bn_lrelu_kernel,
            out_shape=jax.ShapeDtypeStruct((Np, cout_pad), out_dtype),
            grid_spec=pltpu.PrefetchScalarGridSpec(
                num_scalar_prefetch=0,
                grid=(Np // tile_n,),
                in_specs=in_specs,
                out_specs=pl.BlockSpec((tile_n, cout_pad), lambda i: (i, 0)),
            ),
            compiler_params=pltpu.CompilerParams(
                dimension_semantics=("parallel",),
                vmem_limit_bytes=vmem_budget,
            ),
        )(g, w_flat, scale2d, shift2d)

    try:
        out = _call(True)            # single-buffer the grid-invariant blocks
    except Exception:                # pl.Buffered(1) unsupported -> default buffering
        out = _call(False)

    return out[:N, :Cout]


# -----------------------------------------------------------------------------
# Host-side glue: kernel map (neighbor indices per offset) + neighbor gather.
# -----------------------------------------------------------------------------
def build_kernel_map(coords, ks=3, dilation=1):
    """coords: (N, 1+D) int array [batch, x, y, z]; stride = 1 so output coords equal
    input coords.  Returns nbr_idx (K, N) with -1 for missing neighbors."""
    coords = np.asarray(coords)
    N = coords.shape[0]
    D = coords.shape[1] - 1
    r = ks // 2
    offsets = list(itertools.product(range(-r, r + 1), repeat=D))  # K = ks**D
    coord_map = {tuple(c): i for i, c in enumerate(coords.tolist())}
    nbr_idx = np.full((len(offsets), N), -1, dtype=np.int32)
    for k, off in enumerate(offsets):
        off = np.array((0,) + tuple(o * dilation for o in off), dtype=coords.dtype)
        nbr = coords + off
        for n in range(N):
            j = coord_map.get(tuple(nbr[n].tolist()))
            if j is not None:
                nbr_idx[k, n] = j
    return nbr_idx


def gather_features_flat(feats, nbr_idx):
    """feats: (N, Cin), nbr_idx: (K, N) with -1 == missing -> (N, K*Cin) slab,
    already in the layout the kernel consumes (row n = [k0 | k1 | ... | k_{K-1}])."""
    N, Cin = feats.shape
    K = nbr_idx.shape[0]
    feats_pad = jnp.concatenate([feats, jnp.zeros((1, Cin), feats.dtype)], 0)
    idx = jnp.where(nbr_idx < 0, N, nbr_idx)          # missing neighbor -> zero row
    return feats_pad[idx.T].reshape(N, K * Cin)
    # TODO(synk): for large Cin (>=128) move the gather into the kernel (scalar-prefetch
    # nbr_idx + per-offset row-gather DMA) to kill the K-times HBM read inflation.


# -----------------------------------------------------------------------------
# Reference (plain JAX) for verification, at the same (bf16 matmul) precision.
# -----------------------------------------------------------------------------
def reference(gathered_flat, weights, bn_scale, bn_shift, compute_dtype=jnp.bfloat16):
    K, Cin, Cout = weights.shape
    g = gathered_flat.astype(compute_dtype).astype(jnp.float32)
    w = weights.reshape(K * Cin, Cout).astype(compute_dtype).astype(jnp.float32)
    y = jnp.dot(g, w, precision=jax.lax.Precision.HIGHEST)
    y = y * bn_scale[None, :] + bn_shift[None, :]
    return jnp.where(y > 0, y, 0.01 * y)


if __name__ == "__main__":
    # BasicConvolutionBlock(inc, outc, ks=3, stride=1, dilation=1, D=3)
    inc, outc, ks, dilation, D = 4, 8, 3, 1, 3
    K = ks ** D  # 27

    # Small sparse tensor: batch=2, dense 4x4x4 occupancy per batch -> N=128 points.
    batch, S = 2, 4
    grid_pts = np.array(list(itertools.product(range(S), repeat=D)), dtype=np.int32)
    coords = np.concatenate(
        [np.concatenate([np.full((grid_pts.shape[0], 1), b, np.int32), grid_pts], 1)
         for b in range(batch)], 0)                      # (N, 4) = [b, x, y, z]
    N = coords.shape[0]

    key = jax.random.PRNGKey(0)
    k_feat, k_w, k_g, k_b = jax.random.split(key, 4)

    feats = jax.random.normal(k_feat, (N, inc), dtype=jnp.float32)
    weights = jax.random.normal(k_w, (K, inc, outc), dtype=jnp.float32) * 0.1
    gamma = 1.0 + 0.1 * jax.random.normal(k_g, (outc,), dtype=jnp.float32)
    beta = 0.1 * jax.random.normal(k_b, (outc,), dtype=jnp.float32)
    running_mean = jnp.zeros((outc,), jnp.float32)   # PyTorch BN default init
    running_var = jnp.ones((outc,), jnp.float32)
    eps = 1e-5

    # Fold BN (eval mode) into a single per-channel affine transform.
    bn_scale = gamma / jnp.sqrt(running_var + eps)
    bn_shift = beta - running_mean * bn_scale

    # Kernel map + gather (data-dependent indexing kept outside the kernel).
    nbr_idx = build_kernel_map(coords, ks=ks, dilation=dilation)        # (K, N)
    gathered = gather_features_flat(feats, jnp.asarray(nbr_idx))        # (N, K*inc)

    out = sparse_conv_bn_lrelu(gathered, weights, bn_scale, bn_shift)
    out = jax.block_until_ready(out)

    ref = reference(gathered, weights, bn_scale, bn_shift)
    ref_bf16 = ref.astype(jnp.bfloat16)                 # kernel emits bf16
    np.testing.assert_allclose(np.asarray(out, dtype=np.float32),
                               np.asarray(ref_bf16, dtype=np.float32),
                               rtol=2e-2, atol=2e-2)

    print("KERNEL_OK")
</pallas_src>

<mosaic_0001>
module attributes {stable_mosaic.version = 11 : i64} {
  func.func @_conv_bn_lrelu_kernel(%arg0: i32, %arg1: memref<64x128xbf16, #tpu.memory_space<vmem>>, %arg2: memref<128x128xbf16, #tpu.memory_space<vmem>>, %arg3: memref<1x128xf32, #tpu.memory_space<vmem>>, %arg4: memref<1x128xf32, #tpu.memory_space<vmem>>, %arg5: memref<64x128xbf16, #tpu.memory_space<vmem>>) attributes {dimension_semantics = [#tpu.dimension_semantics<parallel>], iteration_bounds = array<i64: 2>, scalar_prefetch = 0 : i64, scratch_operands = 0 : i64, tpu.core_type = #tpu.core_type<tc>, window_params = [{transform_indices = @transform_0, window_bounds = array<i64: 64, 128>}, {pipeline_mode = #tpu.pipeline_mode<synchronous>, transform_indices = @transform_1, window_bounds = array<i64: 128, 128>}, {pipeline_mode = #tpu.pipeline_mode<synchronous>, transform_indices = @transform_2, window_bounds = array<i64: 1, 128>}, {pipeline_mode = #tpu.pipeline_mode<synchronous>, transform_indices = @transform_3, window_bounds = array<i64: 1, 128>}, {transform_indices = @transform_4, window_bounds = array<i64: 64, 128>}]} {
    %c0 = arith.constant 0 : index
    %c0_0 = arith.constant 0 : index
    %0 = vector.load %arg1[%c0, %c0_0] : memref<64x128xbf16, #tpu.memory_space<vmem>>, vector<64x128xbf16>
    %c0_1 = arith.constant 0 : index
    %c0_2 = arith.constant 0 : index
    %1 = vector.load %arg2[%c0_1, %c0_2] : memref<128x128xbf16, #tpu.memory_space<vmem>>, vector<128x128xbf16>
    %cst = arith.constant dense<0.000000e+00> : vector<64x128xf32>
    %2 = tpu.matmul %0, %1, %cst {dimension_numbers = #tpu.dot_dimension_numbers<[1], [0], [0], [1], [0, 0, 1, 1], [], []>} : vector<64x128xbf16>, vector<128x128xbf16>, vector<64x128xf32> -> vector<64x128xf32>
    %c0_3 = arith.constant 0 : index
    %c0_4 = arith.constant 0 : index
    %3 = vector.load %arg3[%c0_3, %c0_4] : memref<1x128xf32, #tpu.memory_space<vmem>>, vector<1x128xf32>
    %4 = vector.broadcast %3 : vector<1x128xf32> to vector<64x128xf32>
    %5 = arith.mulf %2, %4 : vector<64x128xf32>
    %c0_5 = arith.constant 0 : index
    %c0_6 = arith.constant 0 : index
    %6 = vector.load %arg4[%c0_5, %c0_6] : memref<1x128xf32, #tpu.memory_space<vmem>>, vector<1x128xf32>
    %7 = vector.broadcast %6 : vector<1x128xf32> to vector<64x128xf32>
    %8 = arith.addf %5, %7 : vector<64x128xf32>
    %cst_7 = arith.constant 0.000000e+00 : f32
    %9 = vector.broadcast %cst_7 : f32 to vector<64x128xf32>
    %10 = arith.cmpf ogt, %8, %9 : vector<64x128xf32>
    %cst_8 = arith.constant 0.00999999977 : f32
    %11 = vector.broadcast %cst_8 : f32 to vector<64x128xf32>
    %12 = arith.mulf %11, %8 : vector<64x128xf32>
    %13 = arith.select %10, %8, %12 : vector<64x128xi1>, vector<64x128xf32>
    %14 = arith.truncf %13 : vector<64x128xf32> to vector<64x128xbf16>
    %c0_9 = arith.constant 0 : index
    %c0_10 = arith.constant 0 : index
    %15 = vector.load %arg5[%c0_9, %c0_10] : memref<64x128xbf16, #tpu.memory_space<vmem>>, vector<64x128xbf16>
    tpu.vector_store %arg5[%c0_9, %c0_10], %14 {strides = array<i32>} : memref<64x128xbf16, #tpu.memory_space<vmem>>, vector<64x128xbf16>,
    return
  }
  func.func @transform_0(%arg0: i32) -> (i32, i32) {
    %c0_i32 = arith.constant 0 : i32
    %c0_i32_0 = arith.constant 0 : i32
    return %arg0, %c0_i32 : i32, i32
  }
  func.func @transform_1(%arg0: i32) -> (i32, i32) {
    %c0_i32 = arith.constant 0 : i32
    %c0_i32_0 = arith.constant 0 : i32
    %c0_i32_1 = arith.constant 0 : i32
    return %c0_i32, %c0_i32_0 : i32, i32
  }
  func.func @transform_2(%arg0: i32) -> (i32, i32) {
    %c0_i32 = arith.constant 0 : i32
    %c0_i32_0 = arith.constant 0 : i32
    %c0_i32_1 = arith.constant 0 : i32
    return %c0_i32, %c0_i32_0 : i32, i32
  }
  func.func @transform_3(%arg0: i32) -> (i32, i32) {
    %c0_i32 = arith.constant 0 : i32
    %c0_i32_0 = arith.constant 0 : i32
    %c0_i32_1 = arith.constant 0 : i32
    return %c0_i32, %c0_i32_0 : i32, i32
  }
  func.func @transform_4(%arg0: i32) -> (i32, i32) {
    %c0_i32 = arith.constant 0 : i32
    %c0_i32_0 = arith.constant 0 : i32
    return %arg0, %c0_i32 : i32, i32
  }
}

module attributes {stable_mosaic.version = 11 : i64} {
  func.func @_conv_bn_lrelu_kernel(%arg0: i32, %arg1: memref<64x128xbf16, #tpu.memory_space<vmem>>, %arg2: memref<128x128xbf16, #tpu.memory_space<vmem>>, %arg3: memref<1x128xf32, #tpu.memory_space<vmem>>, %arg4: memref<1x128xf32, #tpu.memory_space<vmem>>, %arg5: memref<64x128xbf16, #tpu.memory_space<vmem>>) attributes {dimension_semantics = [#tpu.dimension_semantics<parallel>], iteration_bounds = array<i64: 2>, scalar_prefetch = 0 : i64, scratch_operands = 0 : i64, tpu.core_type = #tpu.core_type<tc>, window_params = [{transform_indices = @transform_0, window_bounds = array<i64: 64, 128>}, {pipeline_mode = #tpu.pipeline_mode<synchronous>, transform_indices = @transform_1, window_bounds = array<i64: 128, 128>}, {pipeline_mode = #tpu.pipeline_mode<synchronous>, transform_indices = @transform_2, window_bounds = array<i64: 1, 128>}, {pipeline_mode = #tpu.pipeline_mode<synchronous>, transform_indices = @transform_3, window_bounds = array<i64: 1, 128>}, {transform_indices = @transform_4, window_bounds = array<i64: 64, 128>}]} {
    %c0 = arith.constant 0 : index
    %c0_0 = arith.constant 0 : index
    %0 = vector.load %arg1[%c0, %c0_0] : memref<64x128xbf16, #tpu.memory_space<vmem>>, vector<64x128xbf16>
    %c0_1 = arith.constant 0 : index
    %c0_2 = arith.constant 0 : index
    %1 = vector.load %arg2[%c0_1, %c0_2] : memref<128x128xbf16, #tpu.memory_space<vmem>>, vector<128x128xbf16>
    %cst = arith.constant dense<0.000000e+00> : vector<64x128xf32>
    %2 = tpu.matmul %0, %1, %cst {dimension_numbers = #tpu.dot_dimension_numbers<[1], [0], [0], [1], [0, 0, 1, 1], [], []>} : vector<64x128xbf16>, vector<128x128xbf16>, vector<64x128xf32> -> vector<64x128xf32>
    %c0_3 = arith.constant 0 : index
    %c0_4 = arith.constant 0 : index
    %3 = vector.load %arg3[%c0_3, %c0_4] : memref<1x128xf32, #tpu.memory_space<vmem>>, vector<1x128xf32>
    %4 = vector.broadcast %3 : vector<1x128xf32> to vector<64x128xf32>
    %5 = arith.mulf %2, %4 : vector<64x128xf32>
    %c0_5 = arith.constant 0 : index
    %c0_6 = arith.constant 0 : index
    %6 = vector.load %arg4[%c0_5, %c0_6] : memref<1x128xf32, #tpu.memory_space<vmem>>, vector<1x128xf32>
    %7 = vector.broadcast %6 : vector<1x128xf32> to vector<64x128xf32>
    %8 = arith.addf %5, %7 : vector<64x128xf32>
    %cst_7 = arith.constant 0.000000e+00 : f32
    %9 = vector.broadcast %cst_7 : f32 to vector<64x128xf32>
    %10 = arith.cmpf ogt, %8, %9 : vector<64x128xf32>
    %cst_8 = arith.constant 0.00999999977 : f32
    %11 = vector.broadcast %cst_8 : f32 to vector<64x128xf32>
    %12 = arith.mulf %11, %8 : vector<64x128xf32>
    %13 = arith.select %10, %8, %12 : vector<64x128xi1>, vector<64x128xf32>
    %14 = arith.truncf %13 : vector<64x128xf32> to vector<64x128xbf16>
    %c0_9 = arith.constant 0 : index
    %c0_10 = arith.constant 0 : index
    %15 = vector.load %arg5[%c0_9, %c0_10] : memref<64x128xbf16, #tpu.memory_space<vmem>>, vector<64x128xbf16>
    tpu.vector_store %arg5[%c0_9, %c0_10], %14 {strides = array<i32>} : memref<64x128xbf16, #tpu.memory_space<vmem>>, vector<64x128xbf16>,
    return
  }
  func.func @transform_0(%arg0: i32) -> (i32, i32) {
    %c0_i32 = arith.constant 0 : i32
    %c0_i32_0 = arith.constant 0 : i32
    return %arg0, %c0_i32 : i32, i32
  }
  func.func @transform_1(%arg0: i32) -> (i32, i32) {
    %c0_i32 = arith.constant 0 : i32
    %c0_i32_0 = arith.constant 0 : i32
    %c0_i32_1 = arith.constant 0 : i32
    return %c0_i32, %c0_i32_0 : i32, i32
  }
  func.func @transform_2(%arg0: i32) -> (i32, i32) {
    %c0_i32 = arith.constant 0 : i32
    %c0_i32_0 = arith.constant 0 : i32
    %c0_i32_1 = arith.constant 0 : i32
    return %c0_i32, %c0_i32_0 : i32, i32
  }
  func.func @transform_3(%arg0: i32) -> (i32, i32) {
    %c0_i32 = arith.constant 0 : i32
    %c0_i32_0 = arith.constant 0 : i32
    %c0_i32_1 = arith.constant 0 : i32
    return %c0_i32, %c0_i32_0 : i32, i32
  }
  func.func @transform_4(%arg0: i32) -> (i32, i32) {
    %c0_i32 = arith.constant 0 : i32
    %c0_i32_0 = arith.constant 0 : i32
    return %arg0, %c0_i32 : i32, i32
  }
}

</mosaic_0001>

<llo_original>
// kernel: tpu_custom_call.1
$region0: #{tpu_custom_call.1}
  #allocation0 [shape = 'u32[]', space=smem, size = 0x4, offset = 0x4, fixed_abs, tag = 'smem constant byte address 0x4 - core index']
  #allocation1 [shape = 'u32[144,128]{1,0:T(1,128)}', space=vmem, size = 0x12000, scoped, tag = 'internal scratch']
  %s0 = inlined_call_operand.hbm [shape: bf16[128,128], index: 0, kind: input, shape index: {}]
  %s1 = inlined_call_operand.hbm [shape: bf16[128,128], index: 1, kind: input, shape index: {}]
  %s2 = inlined_call_operand.vmem [shape: f32[1,128], index: 2, kind: input, shape index: {}]
  %s3 = inlined_call_operand.vmem [shape: f32[1,128], index: 3, kind: input, shape index: {}]
  %s4 = inlined_call_operand.hbm [shape: bf16[128,128], index: 4, kind: output, shape index: {}]
  %s5 = sld [smem:[#allocation0]]
  $region57: #{tpu_custom_call.1} parent=0
    _
  %s7 = ssub.s32 1, %s5
  %s8 = scalar_select 0, %s7, %s5
  $region1: #{tpu_custom_call.1} parent=0
    #allocation2 [shape = 'u8[32768]{0}', space=vmem, size = 0x8000, scoped, tag = 'input window, operand 0']
    #allocation3 [shape = 's32[2]{0}', space=sflag, size = 0x8, scoped, tag = 'scoped memory for tpu_custom_call.1']
    #allocation4 [shape = 's32[2]{0}', space=sflag, size = 0x8, scoped, tag = 'scoped memory for tpu_custom_call.1']
    #allocation5 [shape = 'u8[32768]{0}', space=vmem, size = 0x8000, scoped, tag = 'input window, operand 1, single buffered']
    #allocation6 [shape = 's32[1]{0}', space=sflag, size = 0x4, scoped, tag = 'scoped memory for tpu_custom_call.1']
    #allocation7 [shape = 'u8[32768]{0}', space=vmem, size = 0x8000, scoped, tag = 'output window, operand 0']
    %9 = vsyncpa [#allocation3], 0
    %s10 = scalar_lea.sflag [#allocation3], 1
    %11 = vsyncpa %s10, 0
    %12 = vsyncpa [#allocation6], 0
    %13 = vsyncpa [#allocation4], 0
    %s14 = scalar_lea.sflag [#allocation4], 1
    %15 = vsyncpa %s14, 0
    loop: start=0, step=1, limit=4
    $region2: #{tpu_custom_call.1} parent=1 // loop_pre_header
      _
    $region3: #{tpu_custom_call.1} parent=1 // loop_header
      %s17 = sphi 0, %s21
      %p18 = scmp.ge.s32.totalorder %s17, 4
      %s27 = sphi 0, %s29
      %s30 = sphi 0, %s27
      %s31 = sphi 0, %s30
      %s47 = sphi 0, %s31
      %s51 = sphi 0, %s51
      %s53 = sphi 0, %s51
      %s54 = sphi 0, %s53
      %s68 = sphi 0, %s54
      %s72 = sphi 0, %s72
      %s74 = sphi 0, %s72
      %s75 = sphi 0, %s74
      %s89 = sphi 0, %s75
      %s93 = sphi 0, %s93
      %s95 = sphi 0, %s93
      %s96 = sphi 0, %s95
      %s110 = sphi 0, %s96
      %s116 = sphi 0, %s118
      %s119 = sphi 0, %s116
      %s120 = sphi 0, %s119
      %s136 = sphi 0, %s120
    $region4: #{tpu_custom_call.1} parent=1 // loop_header_branch
      %20 = sbr.rel (%p18) target = $region8
    $region5: #{tpu_custom_call.1} parent=1 // loop_body
      %s22 = ssub.s32 %s17, 1
      %s23 = ssub.s32 %s17, 2
      %s24 = sadd.s32 %s17, 1
      %s25 = ssub.s32 %s17, %s24
      %p26 = scmp.eq.s32.totalorder %s25, 0
      %s28 = sadd.s32 %s27, 1
      %s29 = scalar_select %p26, %s27, %s28
      %p32 = pneg %p26
      %p33 = scmp.eq.s32.totalorder %s17, 1
      %p34 = por %p32, %p33
      %p35 = scmp.ne.s32.totalorder %s27, %s30
      %p36 = scmp.eq.s32.totalorder %s17, 0
      %p37 = por %p35, %p36
      %p38 = scmp.ne.s32.totalorder %s27, %s30
      %p39 = scmp.eq.s32.totalorder %s22, 1
      %p40 = por %p38, %p39
      %p41 = scmp.ne.s32.totalorder %s30, %s31
      %p42 = scmp.eq.s32.totalorder %s22, 0
      %p43 = por %p41, %p42
      %p44 = scmp.ne.s32.totalorder %s30, %s31
      %p45 = scmp.eq.s32.totalorder %s23, 1
      %p46 = por %p44, %p45
      %p48 = scmp.ne.s32.totalorder %s31, %s47
      %p49 = scmp.eq.s32.totalorder %s23, 0
      %p50 = por %p48, %p49
      %s52 = sadd.s32 %s51, 1
      %p55 = scmp.eq.s32.totalorder %s17, 1
      %p56 = scmp.ne.s32.totalorder %s51, %s53
      %p57 = scmp.eq.s32.totalorder %s17, 0
      %p58 = por %p56, %p57
      %p59 = scmp.ne.s32.totalorder %s51, %s53
      %p60 = scmp.eq.s32.totalorder %s22, 1
      %p61 = por %p59, %p60
      %p62 = scmp.ne.s32.totalorder %s53, %s54
      %p63 = scmp.eq.s32.totalorder %s22, 0
      %p64 = por %p62, %p63
      %p65 = scmp.ne.s32.totalorder %s53, %s54
      %p66 = scmp.eq.s32.totalorder %s23, 1
      %p67 = por %p65, %p66
      %p69 = scmp.ne.s32.totalorder %s54, %s68
      %p70 = scmp.eq.s32.totalorder %s23, 0
      %p71 = por %p69, %p70
      %s73 = sadd.s32 %s72, 1
      %p76 = scmp.eq.s32.totalorder %s17, 1
      %p77 = scmp.ne.s32.totalorder %s72, %s74
      %p78 = scmp.eq.s32.totalorder %s17, 0
      %p79 = por %p77, %p78
      %p80 = scmp.ne.s32.totalorder %s72, %s74
      %p81 = scmp.eq.s32.totalorder %s22, 1
      %p82 = por %p80, %p81
      %p83 = scmp.ne.s32.totalorder %s74, %s75
      %p84 = scmp.eq.s32.totalorder %s22, 0
      %p85 = por %p83, %p84
      %p86 = scmp.ne.s32.totalorder %s74, %s75
      %p87 = scmp.eq.s32.totalorder %s23, 1
      %p88 = por %p86, %p87
      %p90 = scmp.ne.s32.totalorder %s75, %s89
      %p91 = scmp.eq.s32.totalorder %s23, 0
      %p92 = por %p90, %p91
      %s94 = sadd.s32 %s93, 1
      %p97 = scmp.eq.s32.totalorder %s17, 1
      %p98 = scmp.ne.s32.totalorder %s93, %s95
      %p99 = scmp.eq.s32.totalorder %s17, 0
      %p100 = por %p98, %p99
      %p101 = scmp.ne.s32.totalorder %s93, %s95
      %p102 = scmp.eq.s32.totalorder %s22, 1
      %p103 = por %p101, %p102
      %p104 = scmp.ne.s32.totalorder %s95, %s96
      %p105 = scmp.eq.s32.totalorder %s22, 0
      %p106 = por %p104, %p105
      %p107 = scmp.ne.s32.totalorder %s95, %s96
      %p108 = scmp.eq.s32.totalorder %s23, 1
      %p109 = por %p107, %p108
      %p111 = scmp.ne.s32.totalorder %s96, %s110
      %p112 = scmp.eq.s32.totalorder %s23, 0
      %p113 = por %p111, %p112
      %s114 = ssub.s32 %s17, %s24
      %p115 = scmp.eq.s32.totalorder %s114, 0
      %s117 = sadd.s32 %s116, 1
      %s118 = scalar_select %p115, %s116, %s117
      %p121 = pneg %p115
      %p122 = scmp.eq.s32.totalorder %s17, 1
      %p123 = por %p121, %p122
      %p124 = scmp.ne.s32.totalorder %s116, %s119
      %p125 = scmp.eq.s32.totalorder %s17, 0
      %p126 = por %p124, %p125
      %p127 = scmp.ne.s32.totalorder %s116, %s119
      %p128 = scmp.eq.s32.totalorder %s22, 1
      %p129 = por %p127, %p128
      %p130 = scmp.ne.s32.totalorder %s119, %s120
      %p131 = scmp.eq.s32.totalorder %s22, 0
      %p132 = por %p130, %p131
      %p133 = scmp.ne.s32.totalorder %s119, %s120
      %p134 = scmp.eq.s32.totalorder %s23, 1
      %p135 = por %p133, %p134
      %p137 = scmp.ne.s32.totalorder %s120, %s136
      %p138 = scmp.eq.s32.totalorder %s23, 0
      %p139 = por %p137, %p138
      %p140 = scmp.le.s32.totalorder 1, %s17
      %p141 = scmp.lt.s32.totalorder %s17, 3
      %p142 = pnand %p140, %p141
      %p143 = pneg %p142
      // Predicated region
      $region9: #{tpu_custom_call.1} parent=5 // pred_check
        _
      $region10: #{tpu_custom_call.1} parent=5 // pred_check_branch
        %145 = sbr.rel (%p142) target = $region12
      $region11: #{tpu_custom_call.1} parent=5 // pred_region
        %s146 = ssub.s32 %s17, 1
        // Predicated region
        $region13: #{tpu_custom_call.1} parent=11 // pred_check
          %p147 = pneg %p64
        $region14: #{tpu_custom_call.1} parent=11 // pred_check_branch
          %149 = sbr.rel (%p147) target = $region16
        $region15: #{tpu_custom_call.1} parent=11 // pred_region
          %s151 = ssub.s32 1024, 1024
          %152 = vsyncadd [#allocation6], %s151
          %s153 = sshll.u32 [#allocation5], 4
          %s154 = int_to_ptr.vmem [resolvable:$true] %s153
          %159 = dma.hbm_to_vmem [thread:$0]  %s1, 1024, %s154, [#allocation6], 64, 64, 4
        $region16: #{tpu_custom_call.1} parent=11 // pred_fallthru
          _
        // Predicated region
        $region17: #{tpu_custom_call.1} parent=11 // pred_check
          %p160 = pneg %p85
        $region18: #{tpu_custom_call.1} parent=11 // pred_check_branch
          %162 = sbr.rel (%p160) target = $region20
        $region19: #{tpu_custom_call.1} parent=11 // pred_region
          _
        $region20: #{tpu_custom_call.1} parent=11 // pred_fallthru
          _
        // Predicated region
        $region21: #{tpu_custom_call.1} parent=11 // pred_check
          %p163 = pneg %p106
        $region22: #{tpu_custom_call.1} parent=11 // pred_check_branch
          %165 = sbr.rel (%p163) target = $region24
        $region23: #{tpu_custom_call.1} parent=11 // pred_region
          _
        $region24: #{tpu_custom_call.1} parent=11 // pred_fallthru
          _
      $region12: #{tpu_custom_call.1} parent=5 // pred_fallthru
        _
      %p166 = scmp.lt.s32.totalorder %s17, 2
      // Predicated region
      $region25: #{tpu_custom_call.1} parent=5 // pred_check
        %p167 = pneg %p166
      $region26: #{tpu_custom_call.1} parent=5 // pred_check_branch
        %169 = sbr.rel (%p167) target = $region28
      $region27: #{tpu_custom_call.1} parent=5 // pred_region
        // Predicated region
        $region29: #{tpu_custom_call.1} parent=27 // pred_check
          %p170 = pneg %p37
        $region30: #{tpu_custom_call.1} parent=27 // pred_check_branch
          %172 = sbr.rel (%p170) target = $region32
        $region31: #{tpu_custom_call.1} parent=27 // pred_region
          %s173 = sand.u32 %s27, 1
          %s174 = scalar_lea.sflag [#allocation3], %s173
          %s175 = sand.u32 %s27, 1
          %s176 = smul.addr %s175, 32
          %s177 = scalar_lea.vmem [#allocation2], %s176
          %s178 = smul.u32 8, %s17
          %s180 = ssub.s32 512, 512
          %181 = vsyncadd %s174, %s180
          %s182 = smul.addr %s178, 64
          %s183 = scalar_lea.hbm %s0, %s182
          %s184 = sshll.u32 %s177, 4
          %s185 = int_to_ptr.vmem [resolvable:$true] %s184
          %190 = dma.hbm_to_vmem [thread:$0]  %s183, 512, %s185, %s174, 64, 64, 4
        $region32: #{tpu_custom_call.1} parent=27 // pred_fallthru
          _
      $region28: #{tpu_custom_call.1} parent=5 // pred_fallthru
        _
      %p191 = scmp.le.s32.totalorder 1, %s17
      %p192 = scmp.lt.s32.totalorder %s17, 3
      %p193 = pnand %p191, %p192
      %p194 = pneg %p193
      // Predicated region
      $region33: #{tpu_custom_call.1} parent=5 // pred_check
        _
      $region34: #{tpu_custom_call.1} parent=5 // pred_check_branch
        %196 = sbr.rel (%p193) target = $region36
      $region35: #{tpu_custom_call.1} parent=5 // pred_region
        %s197 = ssub.s32 %s17, 1
        %s198 = sand.u32 %s30, 1
        %s199 = scalar_lea.sflag [#allocation3], %s198
        %s200 = sand.u32 %s30, 1
        %s201 = smul.addr %s200, 32
        %s202 = scalar_lea.vmem [#allocation2], %s201
        // Predicated region
        $region37: #{tpu_custom_call.1} parent=35 // pred_check
          %p203 = pneg %p43
        $region38: #{tpu_custom_call.1} parent=35 // pred_check_branch
          %205 = sbr.rel (%p203) target = $region40
        $region39: #{tpu_custom_call.1} parent=35 // pred_region
          %206 = dma.done %s199, 512
        $region40: #{tpu_custom_call.1} parent=35 // pred_fallthru
          _
        // Predicated region
        $region41: #{tpu_custom_call.1} parent=35 // pred_check
          %p207 = pneg %p64
        $region42: #{tpu_custom_call.1} parent=35 // pred_check_branch
          %209 = sbr.rel (%p207) target = $region44
        $region43: #{tpu_custom_call.1} parent=35 // pred_region
          %210 = dma.done [#allocation6], 1024
        $region44: #{tpu_custom_call.1} parent=35 // pred_fallthru
          _
        %s211 = sand.u32 %s30, 1
        %s212 = scalar_lea.sflag [#allocation3], %s211
        %s213 = sand.u32 %s30, 1
        %s214 = smul.addr %s213, 32
        %s215 = scalar_lea.vmem [#allocation2], %s214
        %p216 = pneg %p43
        %p217 = pneg %p40
        %p218 = pneg %p64
        %p219 = pneg %p61
        %p220 = pneg %p85
        %p221 = pneg %p82
        %p222 = pneg %p106
        %p223 = pneg %p103
        %p224 = pneg %p132
        %p225 = pneg %p129
        %s226 = sand.u32 %s119, 1
        %s227 = scalar_lea.sflag [#allocation4], %s226
        %s228 = sand.u32 %s119, 1
        %s229 = smul.addr %s228, 32
        %s230 = scalar_lea.vmem [#allocation7], %s229
        %s231 = smul.u32 8, %s22
        %s232 = smul.u32 8, %s22
        %v234 = vld [vmem:[%s202] sm:$0xf]
        %v235 = vld [vmem:[%s202 + $0x4] sm:$0xf]
        %v236 = vld [vmem:[%s202 + $0x8] sm:$0xf]
        %v237 = vld [vmem:[%s202 + $0xc] sm:$0xf]
        %v238 = vld [vmem:[%s202 + $0x10] sm:$0xf]
        %v239 = vld [vmem:[%s202 + $0x14] sm:$0xf]
        %v240 = vld [vmem:[%s202 + $0x18] sm:$0xf]
        %v241 = vld [vmem:[%s202 + $0x1c] sm:$0xf]
        %v242 = vld [vmem:[#allocation5] sm:$0xf]
        %v243 = vld [vmem:[#allocation5 + $0x4] sm:$0xf]
        %v244 = vld [vmem:[#allocation5 + $0x8] sm:$0xf]
        %v245 = vld [vmem:[#allocation5 + $0xc] sm:$0xf]
        %v246 = vld [vmem:[#allocation5 + $0x10] sm:$0xf]
        %v247 = vld [vmem:[#allocation5 + $0x14] sm:$0xf]
        %v248 = vld [vmem:[#allocation5 + $0x18] sm:$0xf]
        %v249 = vld [vmem:[#allocation5 + $0x1c] sm:$0xf]
        %v250 = vld [vmem:[#allocation5 + $0x20] sm:$0xf]
        %v251 = vld [vmem:[#allocation5 + $0x24] sm:$0xf]
        %v252 = vld [vmem:[#allocation5 + $0x28] sm:$0xf]
        %v253 = vld [vmem:[#allocation5 + $0x2c] sm:$0xf]
        %v254 = vld [vmem:[#allocation5 + $0x30] sm:$0xf]
        %v255 = vld [vmem:[#allocation5 + $0x34] sm:$0xf]
        %v256 = vld [vmem:[#allocation5 + $0x38] sm:$0xf]
        %v257 = vld [vmem:[#allocation5 + $0x3c] sm:$0xf]
        %v266 = vunpack.c.l.b16 %v234
        %v267 = vunpack.c.l.b16 %v235
        %v268 = vunpack.c.l.b16 %v236
        %v269 = vunpack.c.l.b16 %v237
        %v270 = vunpack.c.l.b16 %v238
        %v271 = vunpack.c.l.b16 %v239
        %v272 = vunpack.c.l.b16 %v240
        %v273 = vunpack.c.l.b16 %v241
        %v274 = vpack.c.b16 %v267, %v266
        %v275 = vpack.c.b16 %v269, %v268
        %v276 = vpack.c.b16 %v271, %v270
        %v277 = vpack.c.b16 %v273, %v272
        %v298 = vunpack.c.l.b16 %v242
        %v299 = vunpack.c.l.b16 %v243
        %v300 = vunpack.c.l.b16 %v244
        %v301 = vunpack.c.l.b16 %v245
        %v302 = vunpack.c.l.b16 %v246
        %v303 = vunpack.c.l.b16 %v247
        %v304 = vunpack.c.l.b16 %v248
        %v305 = vunpack.c.l.b16 %v249
        %v306 = vunpack.c.l.b16 %v250
        %v307 = vunpack.c.l.b16 %v251
        %v308 = vunpack.c.l.b16 %v252
        %v309 = vunpack.c.l.b16 %v253
        %v310 = vunpack.c.l.b16 %v254
        %v311 = vunpack.c.l.b16 %v255
        %v312 = vunpack.c.l.b16 %v256
        %v313 = vunpack.c.l.b16 %v257
        %v314 = vpack.c.b16 %v299, %v298
        %v315 = vpack.c.b16 %v301, %v300
        %v316 = vpack.c.b16 %v303, %v302
        %v317 = vpack.c.b16 %v305, %v304
        %v318 = vpack.c.b16 %v307, %v306
        %v319 = vpack.c.b16 %v309, %v308
        %v320 = vpack.c.b16 %v311, %v310
        %v321 = vpack.c.b16 %v313, %v312
        %330 = vmatprep.subr.bf16.mxu0 0
        %331 = vmatpush1.bf16.msra.mxu0 %v314
        %332 = vmatprep.subr.bf16.mxu0 0
        %333 = vmatpush1.bf16.msra.mxu0 %v315
        %334 = vmatprep.subr.bf16.mxu0 0
        %335 = vmatpush1.bf16.msra.mxu0 %v316
        %336 = vmatprep.subr.bf16.mxu0 0
        %337 = vmatpush1.bf16.msra.mxu0 %v317
        %338 = vmatprep.subr.bf16.mxu0 0
        %339 = vmatpush1.bf16.msra.mxu0 %v318
        %340 = vmatprep.subr.bf16.mxu0 0
        %341 = vmatpush1.bf16.msra.mxu0 %v319
        %342 = vmatprep.subr.bf16.mxu0 0
        %343 = vmatpush1.bf16.msra.mxu0 %v320
        %344 = vmatprep.subr.bf16.mxu0 0
        %345 = vmatpush1.bf16.msra.mxu0 %v321
        %346 = vmatprep.subr.bf16.mxu0 0
        %347 = vmatpush1.bf16.msra.mxu0 0
        %348 = vmatprep.subr.bf16.mxu0 0
        %349 = vmatpush1.bf16.msra.mxu0 0
        %350 = vmatprep.subr.bf16.mxu0 0
        %351 = vmatpush1.bf16.msra.mxu0 0
        %352 = vmatprep.subr.bf16.mxu0 0
        %353 = vmatpush1.bf16.msra.mxu0 0
        %354 = vmatprep.subr.bf16.mxu0 0
        %355 = vmatpush1.bf16.msra.mxu0 0
        %356 = vmatprep.subr.bf16.mxu0 0
        %357 = vmatpush1.bf16.msra.mxu0 0
        %358 = vmatprep.subr.bf16.mxu0 0
        %359 = vmatpush1.bf16.msra.mxu0 0
        %360 = vmatprep.subr.bf16.mxu0 0
        %361 = vmatpush1.bf16.msra.mxu0 0
        %362 = vmatprep.mubr.bf16.mxu0 0
        %363 = vmatmul.mubr.bf16.gmra.mrb[0].mxu0 %v274
        %v364 = vpop.f32.mrb[0].mxu0
        %v365 = vadd.f32 0.0, %v364
        %v366 = vpop.f32.mrb[0].mxu0
        %v367 = vpop.f32.mrb[0].mxu0
        %v368 = vadd.f32 0.0, %v367
        %v369 = vpop.f32.mrb[0].mxu0
        %370 = vmatprep.mubr.bf16.mxu0 0
        %371 = vmatmul.mubr.bf16.gmra.mrb[0].mxu0 %v275
        %v372 = vpop.f32.mrb[0].mxu0
        %v373 = vadd.f32 0.0, %v372
        %v374 = vpop.f32.mrb[0].mxu0
        %v375 = vpop.f32.mrb[0].mxu0
        %v376 = vadd.f32 0.0, %v375
        %v377 = vpop.f32.mrb[0].mxu0
        %378 = vmatprep.mubr.bf16.mxu0 0
        %379 = vmatmul.mubr.bf16.gmra.mrb[0].mxu0 %v276
        %v380 = vpop.f32.mrb[0].mxu0
        %v381 = vadd.f32 0.0, %v380
        %v382 = vpop.f32.mrb[0].mxu0
        %v383 = vpop.f32.mrb[0].mxu0
        %v384 = vadd.f32 0.0, %v383
        %v385 = vpop.f32.mrb[0].mxu0
        %386 = vmatprep.mubr.bf16.mxu0 0
        %387 = vmatmul.mubr.bf16.gmra.mrb[0].mxu0 %v277
        %v388 = vpop.f32.mrb[0].mxu0
        %v389 = vadd.f32 0.0, %v388
        %v390 = vpop.f32.mrb[0].mxu0
        %v391 = vpop.f32.mrb[0].mxu0
        %v392 = vadd.f32 0.0, %v391
        %v393 = vpop.f32.mrb[0].mxu0
        %394 = vdwg.mxu0
        %v395 = vld [vmem:[%s2] sm:$0x1]
        %v397 = vlaneseq
        %v398 = vshrl.u32 %v397, 7
        %v399 = vsub.s32 0, %v398
        %v400 = vrot.slane %v395, %v399
        %v402 = vmul.f32 %v365, %v400
        %v403 = vmul.f32 %v368, %v400
        %v404 = vmul.f32 %v373, %v400
        %v405 = vmul.f32 %v376, %v400
        %v406 = vmul.f32 %v381, %v400
        %v407 = vmul.f32 %v384, %v400
        %v408 = vmul.f32 %v389, %v400
        %v409 = vmul.f32 %v392, %v400
        %v410 = vld [vmem:[%s3] sm:$0x1]
        %v412 = vlaneseq
        %v413 = vshrl.u32 %v412, 7
        %v414 = vsub.s32 0, %v413
        %v415 = vrot.slane %v410, %v414
        %v417 = vadd.f32 %v402, %v415
        %v418 = vadd.f32 %v403, %v415
        %v419 = vadd.f32 %v404, %v415
        %v420 = vadd.f32 %v405, %v415
        %v421 = vadd.f32 %v406, %v415
        %v422 = vadd.f32 %v407, %v415
        %v423 = vadd.f32 %v408, %v415
        %v424 = vadd.f32 %v409, %v415
        %vm425 = vcmp.gt.f32.partialorder %v417, 0.0
        %vm426 = vcmp.gt.f32.partialorder %v418, 0.0
        %vm427 = vcmp.gt.f32.partialorder %v419, 0.0
        %vm428 = vcmp.gt.f32.partialorder %v420, 0.0
        %vm429 = vcmp.gt.f32.partialorder %v421, 0.0
        %vm430 = vcmp.gt.f32.partialorder %v422, 0.0
        %vm431 = vcmp.gt.f32.partialorder %v423, 0.0
        %vm432 = vcmp.gt.f32.partialorder %v424, 0.0
        %v433 = vmul.f32 %v417, 0.01
        %v434 = vmul.f32 %v418, 0.01
        %v435 = vmul.f32 %v419, 0.01
        %v436 = vmul.f32 %v420, 0.01
        %v437 = vmul.f32 %v421, 0.01
        %v438 = vmul.f32 %v422, 0.01
        %v439 = vmul.f32 %v423, 0.01
        %v440 = vmul.f32 %v424, 0.01
        %v441 = vsel %vm425, %v417, %v433
        %v442 = vsel %vm426, %v418, %v434
        %v443 = vsel %vm427, %v419, %v435
        %v444 = vsel %vm428, %v420, %v436
        %v445 = vsel %vm429, %v421, %v437
        %v446 = vsel %vm430, %v422, %v438
        %v447 = vsel %vm431, %v423, %v439
        %v448 = vsel %vm432, %v424, %v440
        %v449 = vpack.c.bf16 %v442, %v441
        %v450 = vpack.c.bf16 %v444, %v443
        %v451 = vpack.c.bf16 %v446, %v445
        %v452 = vpack.c.bf16 %v448, %v447
        %v457 = vunpack.c.l.b16 %v449
        %v458 = vunpack.c.h.b16 %v449
        %v459 = vunpack.c.l.b16 %v450
        %v460 = vunpack.c.h.b16 %v450
        %v461 = vunpack.c.l.b16 %v451
        %v462 = vunpack.c.h.b16 %v451
        %v463 = vunpack.c.l.b16 %v452
        %v464 = vunpack.c.h.b16 %v452
        %v465 = vpack.c.b16 %v457, %v457
        %v466 = vpack.c.b16 %v458, %v458
        %v467 = vpack.c.b16 %v459, %v459
        %v468 = vpack.c.b16 %v460, %v460
        %v469 = vpack.c.b16 %v461, %v461
        %v470 = vpack.c.b16 %v462, %v462
        %v471 = vpack.c.b16 %v463, %v463
        %v472 = vpack.c.b16 %v464, %v464
        %481 = vst [vmem:[%s230] sm:$0xf] %v465
        %482 = vst [vmem:[%s230 + $0x4] sm:$0xf] %v466
        %483 = vst [vmem:[%s230 + $0x8] sm:$0xf] %v467
        %484 = vst [vmem:[%s230 + $0xc] sm:$0xf] %v468
        %485 = vst [vmem:[%s230 + $0x10] sm:$0xf] %v469
        %486 = vst [vmem:[%s230 + $0x14] sm:$0xf] %v470
        %487 = vst [vmem:[%s230 + $0x18] sm:$0xf] %v471
        %488 = vst [vmem:[%s230 + $0x1c] sm:$0xf] %v472
        %s489 = sand.u32 %s119, 1
        %s490 = scalar_lea.sflag [#allocation4], %s489
        %s491 = sand.u32 %s119, 1
        %s492 = smul.addr %s491, 32
        %s493 = scalar_lea.vmem [#allocation7], %s492
        // Predicated region
        $region45: #{tpu_custom_call.1} parent=35 // pred_check
          %p494 = pneg %p129
        $region46: #{tpu_custom_call.1} parent=35 // pred_check_branch
          %496 = sbr.rel (%p494) target = $region48
        $region47: #{tpu_custom_call.1} parent=35 // pred_region
          %s497 = smul.u32 8, %s22
          %s499 = ssub.s32 512, 512
          %500 = vsyncadd %s490, %s499
          %s501 = smul.addr %s497, 64
          %s502 = scalar_lea.hbm %s4, %s501
          %s503 = sshll.u32 %s493, 4
          %s504 = int_to_ptr.vmem [resolvable:$true] %s503
          %509 = dma.vmem_to_hbm [thread:$0]  %s504, 512, %s502, %s490, 64, 64, 4
        $region48: #{tpu_custom_call.1} parent=35 // pred_fallthru
          _
      $region36: #{tpu_custom_call.1} parent=5 // pred_fallthru
        _
      %p510 = scmp.le.s32.totalorder 2, %s17
      // Predicated region
      $region49: #{tpu_custom_call.1} parent=5 // pred_check
        %p511 = pneg %p510
      $region50: #{tpu_custom_call.1} parent=5 // pred_check_branch
        %513 = sbr.rel (%p511) target = $region52
      $region51: #{tpu_custom_call.1} parent=5 // pred_region
        %s514 = ssub.s32 %s17, 2
        // Predicated region
        $region53: #{tpu_custom_call.1} parent=51 // pred_check
          %p515 = pneg %p135
        $region54: #{tpu_custom_call.1} parent=51 // pred_check_branch
          %517 = sbr.rel (%p515) target = $region56
        $region55: #{tpu_custom_call.1} parent=51 // pred_region
          %s518 = sand.u32 %s120, 1
          %s519 = scalar_lea.sflag [#allocation4], %s518
          %s520 = sand.u32 %s120, 1
          %s521 = smul.addr %s520, 32
          %s522 = scalar_lea.vmem [#allocation7], %s521
          %523 = dma.done %s519, 512
        $region56: #{tpu_custom_call.1} parent=51 // pred_fallthru
          _
      $region52: #{tpu_custom_call.1} parent=5 // pred_fallthru
        _
    $region6: #{tpu_custom_call.1} parent=1 // loop_footer
      %s21 = sadd.s32 1, %s17
    $region7: #{tpu_custom_call.1} parent=1 // loop_footer_branch
      %16 = sbr.rel target = $region3
    $region8: #{tpu_custom_call.1} parent=1 // loop_exit
      _
    %524 = vsyncpa [#allocation3], 1
    %s525 = scalar_lea.sflag [#allocation3], 1
    %526 = vsyncpa %s525, 1
    %527 = vsyncpa [#allocation6], 1
    %528 = vsyncpa [#allocation4], 1
    %s529 = scalar_lea.sflag [#allocation4], 1
    %530 = vsyncpa %s529, 1

// kernel: tpu_custom_call.1
$region0: #{tpu_custom_call.1}
  #allocation0 [shape = 'u32[]', space=smem, size = 0x4, offset = 0x4, fixed_abs, tag = 'smem constant byte address 0x4 - core index']
  #allocation1 [shape = 'u32[144,128]{1,0:T(1,128)}', space=vmem, size = 0x12000, scoped, tag = 'internal scratch']
  %s0 = inlined_call_operand.hbm [shape: bf16[128,128], index: 0, kind: input, shape index: {}]
  %s1 = inlined_call_operand.hbm [shape: bf16[128,128], index: 1, kind: input, shape index: {}]
  %s2 = inlined_call_operand.vmem [shape: f32[1,128], index: 2, kind: input, shape index: {}]
  %s3 = inlined_call_operand.vmem [shape: f32[1,128], index: 3, kind: input, shape index: {}]
  %s4 = inlined_call_operand.hbm [shape: bf16[128,128], index: 4, kind: output, shape index: {}]
  %s5 = sld [smem:[#allocation0]]
  $region57: #{tpu_custom_call.1} parent=0
    _
  %s7 = ssub.s32 1, %s5
  %s8 = scalar_select 0, %s7, %s5
  $region1: #{tpu_custom_call.1} parent=0
    #allocation2 [shape = 'u8[32768]{0}', space=vmem, size = 0x8000, scoped, tag = 'input window, operand 0']
    #allocation3 [shape = 's32[2]{0}', space=sflag, size = 0x8, scoped, tag = 'scoped memory for tpu_custom_call.1']
    #allocation4 [shape = 's32[2]{0}', space=sflag, size = 0x8, scoped, tag = 'scoped memory for tpu_custom_call.1']
    #allocation5 [shape = 'u8[32768]{0}', space=vmem, size = 0x8000, scoped, tag = 'input window, operand 1, single buffered']
    #allocation6 [shape = 's32[1]{0}', space=sflag, size = 0x4, scoped, tag = 'scoped memory for tpu_custom_call.1']
    #allocation7 [shape = 'u8[32768]{0}', space=vmem, size = 0x8000, scoped, tag = 'output window, operand 0']
    %9 = vsyncpa [#allocation3], 0
    %s10 = scalar_lea.sflag [#allocation3], 1
    %11 = vsyncpa %s10, 0
    %12 = vsyncpa [#allocation6], 0
    %13 = vsyncpa [#allocation4], 0
    %s14 = scalar_lea.sflag [#allocation4], 1
    %15 = vsyncpa %s14, 0
    loop: start=0, step=1, limit=4
    $region2: #{tpu_custom_call.1} parent=1 // loop_pre_header
      _
    $region3: #{tpu_custom_call.1} parent=1 // loop_header
      %s17 = sphi 0, %s21
      %p18 = scmp.ge.s32.totalorder %s17, 4
      %s27 = sphi 0, %s29
      %s30 = sphi 0, %s27
      %s31 = sphi 0, %s30
      %s47 = sphi 0, %s31
      %s51 = sphi 0, %s51
      %s53 = sphi 0, %s51
      %s54 = sphi 0, %s53
      %s68 = sphi 0, %s54
      %s72 = sphi 0, %s72
      %s74 = sphi 0, %s72
      %s75 = sphi 0, %s74
      %s89 = sphi 0, %s75
      %s93 = sphi 0, %s93
      %s95 = sphi 0, %s93
      %s96 = sphi 0, %s95
      %s110 = sphi 0, %s96
      %s116 = sphi 0, %s118
      %s119 = sphi 0, %s116
      %s120 = sphi 0, %s119
      %s136 = sphi 0, %s120
    $region4: #{tpu_custom_call.1} parent=1 // loop_header_branch
      %20 = sbr.rel (%p18) target = $region8
    $region5: #{tpu_custom_call.1} parent=1 // loop_body
      %s22 = ssub.s32 %s17, 1
      %s23 = ssub.s32 %s17, 2
      %s24 = sadd.s32 %s17, 1
      %s25 = ssub.s32 %s17, %s24
      %p26 = scmp.eq.s32.totalorder %s25, 0
      %s28 = sadd.s32 %s27, 1
      %s29 = scalar_select %p26, %s27, %s28
      %p32 = pneg %p26
      %p33 = scmp.eq.s32.totalorder %s17, 1
      %p34 = por %p32, %p33
      %p35 = scmp.ne.s32.totalorder %s27, %s30
      %p36 = scmp.eq.s32.totalorder %s17, 0
      %p37 = por %p35, %p36
      %p38 = scmp.ne.s32.totalorder %s27, %s30
      %p39 = scmp.eq.s32.totalorder %s22, 1
      %p40 = por %p38, %p39
      %p41 = scmp.ne.s32.totalorder %s30, %s31
      %p42 = scmp.eq.s32.totalorder %s22, 0
      %p43 = por %p41, %p42
      %p44 = scmp.ne.s32.totalorder %s30, %s31
      %p45 = scmp.eq.s32.totalorder %s23, 1
      %p46 = por %p44, %p45
      %p48 = scmp.ne.s32.totalorder %s31, %s47
      %p49 = scmp.eq.s32.totalorder %s23, 0
      %p50 = por %p48, %p49
      %s52 = sadd.s32 %s51, 1
      %p55 = scmp.eq.s32.totalorder %s17, 1
      %p56 = scmp.ne.s32.totalorder %s51, %s53
      %p57 = scmp.eq.s32.totalorder %s17, 0
      %p58 = por %p56, %p57
      %p59 = scmp.ne.s32.totalorder %s51, %s53
      %p60 = scmp.eq.s32.totalorder %s22, 1
      %p61 = por %p59, %p60
      %p62 = scmp.ne.s32.totalorder %s53, %s54
      %p63 = scmp.eq.s32.totalorder %s22, 0
      %p64 = por %p62, %p63
      %p65 = scmp.ne.s32.totalorder %s53, %s54
      %p66 = scmp.eq.s32.totalorder %s23, 1
      %p67 = por %p65, %p66
      %p69 = scmp.ne.s32.totalorder %s54, %s68
      %p70 = scmp.eq.s32.totalorder %s23, 0
      %p71 = por %p69, %p70
      %s73 = sadd.s32 %s72, 1
      %p76 = scmp.eq.s32.totalorder %s17, 1
      %p77 = scmp.ne.s32.totalorder %s72, %s74
      %p78 = scmp.eq.s32.totalorder %s17, 0
      %p79 = por %p77, %p78
      %p80 = scmp.ne.s32.totalorder %s72, %s74
      %p81 = scmp.eq.s32.totalorder %s22, 1
      %p82 = por %p80, %p81
      %p83 = scmp.ne.s32.totalorder %s74, %s75
      %p84 = scmp.eq.s32.totalorder %s22, 0
      %p85 = por %p83, %p84
      %p86 = scmp.ne.s32.totalorder %s74, %s75
      %p87 = scmp.eq.s32.totalorder %s23, 1
      %p88 = por %p86, %p87
      %p90 = scmp.ne.s32.totalorder %s75, %s89
      %p91 = scmp.eq.s32.totalorder %s23, 0
      %p92 = por %p90, %p91
      %s94 = sadd.s32 %s93, 1
      %p97 = scmp.eq.s32.totalorder %s17, 1
      %p98 = scmp.ne.s32.totalorder %s93, %s95
      %p99 = scmp.eq.s32.totalorder %s17, 0
      %p100 = por %p98, %p99
      %p101 = scmp.ne.s32.totalorder %s93, %s95
      %p102 = scmp.eq.s32.totalorder %s22, 1
      %p103 = por %p101, %p102
      %p104 = scmp.ne.s32.totalorder %s95, %s96
      %p105 = scmp.eq.s32.totalorder %s22, 0
      %p106 = por %p104, %p105
      %p107 = scmp.ne.s32.totalorder %s95, %s96
      %p108 = scmp.eq.s32.totalorder %s23, 1
      %p109 = por %p107, %p108
      %p111 = scmp.ne.s32.totalorder %s96, %s110
      %p112 = scmp.eq.s32.totalorder %s23, 0
      %p113 = por %p111, %p112
      %s114 = ssub.s32 %s17, %s24
      %p115 = scmp.eq.s32.totalorder %s114, 0
      %s117 = sadd.s32 %s116, 1
      %s118 = scalar_select %p115, %s116, %s117
      %p121 = pneg %p115
      %p122 = scmp.eq.s32.totalorder %s17, 1
      %p123 = por %p121, %p122
      %p124 = scmp.ne.s32.totalorder %s116, %s119
      %p125 = scmp.eq.s32.totalorder %s17, 0
      %p126 = por %p124, %p125
      %p127 = scmp.ne.s32.totalorder %s116, %s119
      %p128 = scmp.eq.s32.totalorder %s22, 1
      %p129 = por %p127, %p128
      %p130 = scmp.ne.s32.totalorder %s119, %s120
      %p131 = scmp.eq.s32.totalorder %s22, 0
      %p132 = por %p130, %p131
      %p133 = scmp.ne.s32.totalorder %s119, %s120
      %p134 = scmp.eq.s32.totalorder %s23, 1
      %p135 = por %p133, %p134
      %p137 = scmp.ne.s32.totalorder %s120, %s136
      %p138 = scmp.eq.s32.totalorder %s23, 0
      %p139 = por %p137, %p138
      %p140 = scmp.le.s32.totalorder 1, %s17
      %p141 = scmp.lt.s32.totalorder %s17, 3
      %p142 = pnand %p140, %p141
      %p143 = pneg %p142
      // Predicated region
      $region9: #{tpu_custom_call.1} parent=5 // pred_check
        _
      $region10: #{tpu_custom_call.1} parent=5 // pred_check_branch
        %145 = sbr.rel (%p142) target = $region12
      $region11: #{tpu_custom_call.1} parent=5 // pred_region
        %s146 = ssub.s32 %s17, 1
        // Predicated region
        $region13: #{tpu_custom_call.1} parent=11 // pred_check
          %p147 = pneg %p64
        $region14: #{tpu_custom_call.1} parent=11 // pred_check_branch
          %149 = sbr.rel (%p147) target = $region16
        $region15: #{tpu_custom_call.1} parent=11 // pred_region
          %s151 = ssub.s32 1024, 1024
          %152 = vsyncadd [#allocation6], %s151
          %s153 = sshll.u32 [#allocation5], 4
          %s154 = int_to_ptr.vmem [resolvable:$true] %s153
          %159 = dma.hbm_to_vmem [thread:$0]  %s1, 1024, %s154, [#allocation6], 64, 64, 4
        $region16: #{tpu_custom_call.1} parent=11 // pred_fallthru
          _
        // Predicated region
        $region17: #{tpu_custom_call.1} parent=11 // pred_check
          %p160 = pneg %p85
        $region18: #{tpu_custom_call.1} parent=11 // pred_check_branch
          %162 = sbr.rel (%p160) target = $region20
        $region19: #{tpu_custom_call.1} parent=11 // pred_region
          _
        $region20: #{tpu_custom_call.1} parent=11 // pred_fallthru
          _
        // Predicated region
        $region21: #{tpu_custom_call.1} parent=11 // pred_check
          %p163 = pneg %p106
        $region22: #{tpu_custom_call.1} parent=11 // pred_check_branch
          %165 = sbr.rel (%p163) target = $region24
        $region23: #{tpu_custom_call.1} parent=11 // pred_region
          _
        $region24: #{tpu_custom_call.1} parent=11 // pred_fallthru
          _
      $region12: #{tpu_custom_call.1} parent=5 // pred_fallthru
        _
      %p166 = scmp.lt.s32.totalorder %s17, 2
      // Predicated region
      $region25: #{tpu_custom_call.1} parent=5 // pred_check
        %p167 = pneg %p166
      $region26: #{tpu_custom_call.1} parent=5 // pred_check_branch
        %169 = sbr.rel (%p167) target = $region28
      $region27: #{tpu_custom_call.1} parent=5 // pred_region
        // Predicated region
        $region29: #{tpu_custom_call.1} parent=27 // pred_check
          %p170 = pneg %p37
        $region30: #{tpu_custom_call.1} parent=27 // pred_check_branch
          %172 = sbr.rel (%p170) target = $region32
        $region31: #{tpu_custom_call.1} parent=27 // pred_region
          %s173 = sand.u32 %s27, 1
          %s174 = scalar_lea.sflag [#allocation3], %s173
          %s175 = sand.u32 %s27, 1
          %s176 = smul.addr %s175, 32
          %s177 = scalar_lea.vmem [#allocation2], %s176
          %s178 = smul.u32 8, %s17
          %s180 = ssub.s32 512, 512
          %181 = vsyncadd %s174, %s180
          %s182 = smul.addr %s178, 64
          %s183 = scalar_lea.hbm %s0, %s182
          %s184 = sshll.u32 %s177, 4
          %s185 = int_to_ptr.vmem [resolvable:$true] %s184
          %190 = dma.hbm_to_vmem [thread:$0]  %s183, 512, %s185, %s174, 64, 64, 4
        $region32: #{tpu_custom_call.1} parent=27 // pred_fallthru
          _
      $region28: #{tpu_custom_call.1} parent=5 // pred_fallthru
        _
      %p191 = scmp.le.s32.totalorder 1, %s17
      %p192 = scmp.lt.s32.totalorder %s17, 3
      %p193 = pnand %p191, %p192
      %p194 = pneg %p193
      // Predicated region
      $region33: #{tpu_custom_call.1} parent=5 // pred_check
        _
      $region34: #{tpu_custom_call.1} parent=5 // pred_check_branch
        %196 = sbr.rel (%p193) target = $region36
      $region35: #{tpu_custom_call.1} parent=5 // pred_region
        %s197 = ssub.s32 %s17, 1
        %s198 = sand.u32 %s30, 1
        %s199 = scalar_lea.sflag [#allocation3], %s198
        %s200 = sand.u32 %s30, 1
        %s201 = smul.addr %s200, 32
        %s202 = scalar_lea.vmem [#allocation2], %s201
        // Predicated region
        $region37: #{tpu_custom_call.1} parent=35 // pred_check
          %p203 = pneg %p43
        $region38: #{tpu_custom_call.1} parent=35 // pred_check_branch
          %205 = sbr.rel (%p203) target = $region40
        $region39: #{tpu_custom_call.1} parent=35 // pred_region
          %206 = dma.done %s199, 512
        $region40: #{tpu_custom_call.1} parent=35 // pred_fallthru
          _
        // Predicated region
        $region41: #{tpu_custom_call.1} parent=35 // pred_check
          %p207 = pneg %p64
        $region42: #{tpu_custom_call.1} parent=35 // pred_check_branch
          %209 = sbr.rel (%p207) target = $region44
        $region43: #{tpu_custom_call.1} parent=35 // pred_region
          %210 = dma.done [#allocation6], 1024
        $region44: #{tpu_custom_call.1} parent=35 // pred_fallthru
          _
        %s211 = sand.u32 %s30, 1
        %s212 = scalar_lea.sflag [#allocation3], %s211
        %s213 = sand.u32 %s30, 1
        %s214 = smul.addr %s213, 32
        %s215 = scalar_lea.vmem [#allocation2], %s214
        %p216 = pneg %p43
        %p217 = pneg %p40
        %p218 = pneg %p64
        %p219 = pneg %p61
        %p220 = pneg %p85
        %p221 = pneg %p82
        %p222 = pneg %p106
        %p223 = pneg %p103
        %p224 = pneg %p132
        %p225 = pneg %p129
        %s226 = sand.u32 %s119, 1
        %s227 = scalar_lea.sflag [#allocation4], %s226
        %s228 = sand.u32 %s119, 1
        %s229 = smul.addr %s228, 32
        %s230 = scalar_lea.vmem [#allocation7], %s229
        %s231 = smul.u32 8, %s22
        %s232 = smul.u32 8, %s22
        %v234 = vld [vmem:[%s202] sm:$0xf]
        %v235 = vld [vmem:[%s202 + $0x4] sm:$0xf]
        %v236 = vld [vmem:[%s202 + $0x8] sm:$0xf]
        %v237 = vld [vmem:[%s202 + $0xc] sm:$0xf]
        %v238 = vld [vmem:[%s202 + $0x10] sm:$0xf]
        %v239 = vld [vmem:[%s202 + $0x14] sm:$0xf]
        %v240 = vld [vmem:[%s202 + $0x18] sm:$0xf]
        %v241 = vld [vmem:[%s202 + $0x1c] sm:$0xf]
        %v242 = vld [vmem:[#allocation5] sm:$0xf]
        %v243 = vld [vmem:[#allocation5 + $0x4] sm:$0xf]
        %v244 = vld [vmem:[#allocation5 + $0x8] sm:$0xf]
        %v245 = vld [vmem:[#allocation5 + $0xc] sm:$0xf]
        %v246 = vld [vmem:[#allocation5 + $0x10] sm:$0xf]
        %v247 = vld [vmem:[#allocation5 + $0x14] sm:$0xf]
        %v248 = vld [vmem:[#allocation5 + $0x18] sm:$0xf]
        %v249 = vld [vmem:[#allocation5 + $0x1c] sm:$0xf]
        %v250 = vld [vmem:[#allocation5 + $0x20] sm:$0xf]
        %v251 = vld [vmem:[#allocation5 + $0x24] sm:$0xf]
        %v252 = vld [vmem:[#allocation5 + $0x28] sm:$0xf]
        %v253 = vld [vmem:[#allocation5 + $0x2c] sm:$0xf]
        %v254 = vld [vmem:[#allocation5 + $0x30] sm:$0xf]
        %v255 = vld [vmem:[#allocation5 + $0x34] sm:$0xf]
        %v256 = vld [vmem:[#allocation5 + $0x38] sm:$0xf]
        %v257 = vld [vmem:[#allocation5 + $0x3c] sm:$0xf]
        %v266 = vunpack.c.l.b16 %v234
        %v267 = vunpack.c.l.b16 %v235
        %v268 = vunpack.c.l.b16 %v236
        %v269 = vunpack.c.l.b16 %v237
        %v270 = vunpack.c.l.b16 %v238
        %v271 = vunpack.c.l.b16 %v239
        %v272 = vunpack.c.l.b16 %v240
        %v273 = vunpack.c.l.b16 %v241
        %v274 = vpack.c.b16 %v267, %v266
        %v275 = vpack.c.b16 %v269, %v268
        %v276 = vpack.c.b16 %v271, %v270
        %v277 = vpack.c.b16 %v273, %v272
        %v298 = vunpack.c.l.b16 %v242
        %v299 = vunpack.c.l.b16 %v243
        %v300 = vunpack.c.l.b16 %v244
        %v301 = vunpack.c.l.b16 %v245
        %v302 = vunpack.c.l.b16 %v246
        %v303 = vunpack.c.l.b16 %v247
        %v304 = vunpack.c.l.b16 %v248
        %v305 = vunpack.c.l.b16 %v249
        %v306 = vunpack.c.l.b16 %v250
        %v307 = vunpack.c.l.b16 %v251
        %v308 = vunpack.c.l.b16 %v252
        %v309 = vunpack.c.l.b16 %v253
        %v310 = vunpack.c.l.b16 %v254
        %v311 = vunpack.c.l.b16 %v255
        %v312 = vunpack.c.l.b16 %v256
        %v313 = vunpack.c.l.b16 %v257
        %v314 = vpack.c.b16 %v299, %v298
        %v315 = vpack.c.b16 %v301, %v300
        %v316 = vpack.c.b16 %v303, %v302
        %v317 = vpack.c.b16 %v305, %v304
        %v318 = vpack.c.b16 %v307, %v306
        %v319 = vpack.c.b16 %v309, %v308
        %v320 = vpack.c.b16 %v311, %v310
        %v321 = vpack.c.b16 %v313, %v312
        %330 = vmatprep.subr.bf16.mxu0 0
        %331 = vmatpush1.bf16.msra.mxu0 %v314
        %332 = vmatprep.subr.bf16.mxu0 0
        %333 = vmatpush1.bf16.msra.mxu0 %v315
        %334 = vmatprep.subr.bf16.mxu0 0
        %335 = vmatpush1.bf16.msra.mxu0 %v316
        %336 = vmatprep.subr.bf16.mxu0 0
        %337 = vmatpush1.bf16.msra.mxu0 %v317
        %338 = vmatprep.subr.bf16.mxu0 0
        %339 = vmatpush1.bf16.msra.mxu0 %v318
        %340 = vmatprep.subr.bf16.mxu0 0
        %341 = vmatpush1.bf16.msra.mxu0 %v319
        %342 = vmatprep.subr.bf16.mxu0 0
        %343 = vmatpush1.bf16.msra.mxu0 %v320
        %344 = vmatprep.subr.bf16.mxu0 0
        %345 = vmatpush1.bf16.msra.mxu0 %v321
        %346 = vmatprep.subr.bf16.mxu0 0
        %347 = vmatpush1.bf16.msra.mxu0 0
        %348 = vmatprep.subr.bf16.mxu0 0
        %349 = vmatpush1.bf16.msra.mxu0 0
        %350 = vmatprep.subr.bf16.mxu0 0
        %351 = vmatpush1.bf16.msra.mxu0 0
        %352 = vmatprep.subr.bf16.mxu0 0
        %353 = vmatpush1.bf16.msra.mxu0 0
        %354 = vmatprep.subr.bf16.mxu0 0
        %355 = vmatpush1.bf16.msra.mxu0 0
        %356 = vmatprep.subr.bf16.mxu0 0
        %357 = vmatpush1.bf16.msra.mxu0 0
        %358 = vmatprep.subr.bf16.mxu0 0
        %359 = vmatpush1.bf16.msra.mxu0 0
        %360 = vmatprep.subr.bf16.mxu0 0
        %361 = vmatpush1.bf16.msra.mxu0 0
        %362 = vmatprep.mubr.bf16.mxu0 0
        %363 = vmatmul.mubr.bf16.gmra.mrb[0].mxu0 %v274
        %v364 = vpop.f32.mrb[0].mxu0
        %v365 = vadd.f32 0.0, %v364
        %v366 = vpop.f32.mrb[0].mxu0
        %v367 = vpop.f32.mrb[0].mxu0
        %v368 = vadd.f32 0.0, %v367
        %v369 = vpop.f32.mrb[0].mxu0
        %370 = vmatprep.mubr.bf16.mxu0 0
        %371 = vmatmul.mubr.bf16.gmra.mrb[0].mxu0 %v275
        %v372 = vpop.f32.mrb[0].mxu0
        %v373 = vadd.f32 0.0, %v372
        %v374 = vpop.f32.mrb[0].mxu0
        %v375 = vpop.f32.mrb[0].mxu0
        %v376 = vadd.f32 0.0, %v375
        %v377 = vpop.f32.mrb[0].mxu0
        %378 = vmatprep.mubr.bf16.mxu0 0
        %379 = vmatmul.mubr.bf16.gmra.mrb[0].mxu0 %v276
        %v380 = vpop.f32.mrb[0].mxu0
        %v381 = vadd.f32 0.0, %v380
        %v382 = vpop.f32.mrb[0].mxu0
        %v383 = vpop.f32.mrb[0].mxu0
        %v384 = vadd.f32 0.0, %v383
        %v385 = vpop.f32.mrb[0].mxu0
        %386 = vmatprep.mubr.bf16.mxu0 0
        %387 = vmatmul.mubr.bf16.gmra.mrb[0].mxu0 %v277
        %v388 = vpop.f32.mrb[0].mxu0
        %v389 = vadd.f32 0.0, %v388
        %v390 = vpop.f32.mrb[0].mxu0
        %v391 = vpop.f32.mrb[0].mxu0
        %v392 = vadd.f32 0.0, %v391
        %v393 = vpop.f32.mrb[0].mxu0
        %394 = vdwg.mxu0
        %v395 = vld [vmem:[%s2] sm:$0x1]
        %v397 = vlaneseq
        %v398 = vshrl.u32 %v397, 7
        %v399 = vsub.s32 0, %v398
        %v400 = vrot.slane %v395, %v399
        %v402 = vmul.f32 %v365, %v400
        %v403 = vmul.f32 %v368, %v400
        %v404 = vmul.f32 %v373, %v400
        %v405 = vmul.f32 %v376, %v400
        %v406 = vmul.f32 %v381, %v400
        %v407 = vmul.f32 %v384, %v400
        %v408 = vmul.f32 %v389, %v400
        %v409 = vmul.f32 %v392, %v400
        %v410 = vld [vmem:[%s3] sm:$0x1]
        %v412 = vlaneseq
        %v413 = vshrl.u32 %v412, 7
        %v414 = vsub.s32 0, %v413
        %v415 = vrot.slane %v410, %v414
        %v417 = vadd.f32 %v402, %v415
        %v418 = vadd.f32 %v403, %v415
        %v419 = vadd.f32 %v404, %v415
        %v420 = vadd.f32 %v405, %v415
        %v421 = vadd.f32 %v406, %v415
        %v422 = vadd.f32 %v407, %v415
        %v423 = vadd.f32 %v408, %v415
        %v424 = vadd.f32 %v409, %v415
        %vm425 = vcmp.gt.f32.partialorder %v417, 0.0
        %vm426 = vcmp.gt.f32.partialorder %v418, 0.0
        %vm427 = vcmp.gt.f32.partialorder %v419, 0.0
        %vm428 = vcmp.gt.f32.partialorder %v420, 0.0
        %vm429 = vcmp.gt.f32.partialorder %v421, 0.0
        %vm430 = vcmp.gt.f32.partialorder %v422, 0.0
        %vm431 = vcmp.gt.f32.partialorder %v423, 0.0
        %vm432 = vcmp.gt.f32.partialorder %v424, 0.0
        %v433 = vmul.f32 %v417, 0.01
        %v434 = vmul.f32 %v418, 0.01
        %v435 = vmul.f32 %v419, 0.01
        %v436 = vmul.f32 %v420, 0.01
        %v437 = vmul.f32 %v421, 0.01
        %v438 = vmul.f32 %v422, 0.01
        %v439 = vmul.f32 %v423, 0.01
        %v440 = vmul.f32 %v424, 0.01
        %v441 = vsel %vm425, %v417, %v433
        %v442 = vsel %vm426, %v418, %v434
        %v443 = vsel %vm427, %v419, %v435
        %v444 = vsel %vm428, %v420, %v436
        %v445 = vsel %vm429, %v421, %v437
        %v446 = vsel %vm430, %v422, %v438
        %v447 = vsel %vm431, %v423, %v439
        %v448 = vsel %vm432, %v424, %v440
        %v449 = vpack.c.bf16 %v442, %v441
        %v450 = vpack.c.bf16 %v444, %v443
        %v451 = vpack.c.bf16 %v446, %v445
        %v452 = vpack.c.bf16 %v448, %v447
        %v457 = vunpack.c.l.b16 %v449
        %v458 = vunpack.c.h.b16 %v449
        %v459 = vunpack.c.l.b16 %v450
        %v460 = vunpack.c.h.b16 %v450
        %v461 = vunpack.c.l.b16 %v451
        %v462 = vunpack.c.h.b16 %v451
        %v463 = vunpack.c.l.b16 %v452
        %v464 = vunpack.c.h.b16 %v452
        %v465 = vpack.c.b16 %v457, %v457
        %v466 = vpack.c.b16 %v458, %v458
        %v467 = vpack.c.b16 %v459, %v459
        %v468 = vpack.c.b16 %v460, %v460
        %v469 = vpack.c.b16 %v461, %v461
        %v470 = vpack.c.b16 %v462, %v462
        %v471 = vpack.c.b16 %v463, %v463
        %v472 = vpack.c.b16 %v464, %v464
        %481 = vst [vmem:[%s230] sm:$0xf] %v465
        %482 = vst [vmem:[%s230 + $0x4] sm:$0xf] %v466
        %483 = vst [vmem:[%s230 + $0x8] sm:$0xf] %v467
        %484 = vst [vmem:[%s230 + $0xc] sm:$0xf] %v468
        %485 = vst [vmem:[%s230 + $0x10] sm:$0xf] %v469
        %486 = vst [vmem:[%s230 + $0x14] sm:$0xf] %v470
        %487 = vst [vmem:[%s230 + $0x18] sm:$0xf] %v471
        %488 = vst [vmem:[%s230 + $0x1c] sm:$0xf] %v472
        %s489 = sand.u32 %s119, 1
        %s490 = scalar_lea.sflag [#allocation4], %s489
        %s491 = sand.u32 %s119, 1
        %s492 = smul.addr %s491, 32
        %s493 = scalar_lea.vmem [#allocation7], %s492
        // Predicated region
        $region45: #{tpu_custom_call.1} parent=35 // pred_check
          %p494 = pneg %p129
        $region46: #{tpu_custom_call.1} parent=35 // pred_check_branch
          %496 = sbr.rel (%p494) target = $region48
        $region47: #{tpu_custom_call.1} parent=35 // pred_region
          %s497 = smul.u32 8, %s22
          %s499 = ssub.s32 512, 512
          %500 = vsyncadd %s490, %s499
          %s501 = smul.addr %s497, 64
          %s502 = scalar_lea.hbm %s4, %s501
          %s503 = sshll.u32 %s493, 4
          %s504 = int_to_ptr.vmem [resolvable:$true] %s503
          %509 = dma.vmem_to_hbm [thread:$0]  %s504, 512, %s502, %s490, 64, 64, 4
        $region48: #{tpu_custom_call.1} parent=35 // pred_fallthru
          _
      $region36: #{tpu_custom_call.1} parent=5 // pred_fallthru
        _
      %p510 = scmp.le.s32.totalorder 2, %s17
      // Predicated region
      $region49: #{tpu_custom_call.1} parent=5 // pred_check
        %p511 = pneg %p510
      $region50: #{tpu_custom_call.1} parent=5 // pred_check_branch
        %513 = sbr.rel (%p511) target = $region52
      $region51: #{tpu_custom_call.1} parent=5 // pred_region
        %s514 = ssub.s32 %s17, 2
        // Predicated region
        $region53: #{tpu_custom_call.1} parent=51 // pred_check
          %p515 = pneg %p135
        $region54: #{tpu_custom_call.1} parent=51 // pred_check_branch
          %517 = sbr.rel (%p515) target = $region56
        $region55: #{tpu_custom_call.1} parent=51 // pred_region
          %s518 = sand.u32 %s120, 1
          %s519 = scalar_lea.sflag [#allocation4], %s518
          %s520 = sand.u32 %s120, 1
          %s521 = smul.addr %s520, 32
          %s522 = scalar_lea.vmem [#allocation7], %s521
          %523 = dma.done %s519, 512
        $region56: #{tpu_custom_call.1} parent=51 // pred_fallthru
          _
      $region52: #{tpu_custom_call.1} parent=5 // pred_fallthru
        _
    $region6: #{tpu_custom_call.1} parent=1 // loop_footer
      %s21 = sadd.s32 1, %s17
    $region7: #{tpu_custom_call.1} parent=1 // loop_footer_branch
      %16 = sbr.rel target = $region3
    $region8: #{tpu_custom_call.1} parent=1 // loop_exit
      _
    %524 = vsyncpa [#allocation3], 1
    %s525 = scalar_lea.sflag [#allocation3], 1
    %526 = vsyncpa %s525, 1
    %527 = vsyncpa [#allocation6], 1
    %528 = vsyncpa [#allocation4], 1
    %s529 = scalar_lea.sflag [#allocation4], 1
    %530 = vsyncpa %s529, 1

</llo_original>
